<compile_context>
chip_gen: v7x
topology: tpu7x:2x2x1
jax: 0.10.0
libtpu: 0.0.40
codegen_flags: <defaults>
</compile_context>

<pallas_src>
import jax
import jax.numpy as jnp
from jax.experimental import pallas as pl
from jax.experimental.pallas import tpu as pltpu

_LANES = 128                     # vreg lane width
_LANE_BLOCK = 4 * _LANES         # widened last dim (512) -> long, unmasked vst / DMA bursts
_TARGET_BLOCK_BYTES = 4 << 20    # ~4 MiB per buffer (amortizes ~0.35 us/grid-step overhead)
_VMEM_LIMIT_BYTES = 32 << 20     # explicit scoped-VMEM limit; fits v7x's 64 MiB physical VMEM


def _identity_kernel(x_ref, o_ref):
    # Pure passthrough: full-tile VMEM load + lane-dense store.
    o_ref[...] = x_ref[...]


def _sublane_multiple(dtype):
    # Sub-32-bit dtypes pack along sublanes: 8 for 4-byte, 16 for 2-byte, 32 for 1-byte.
    itemsize = jnp.dtype(dtype).itemsize
    return max(8, 32 // max(1, itemsize))


def _round_up(a, m):
    return -(-a // m) * m


@jax.jit
def pallas_identity(x):
    """Bit-exact identity through a Pallas kernel (debug/verification path only).

    The input is flattened and viewed as a lane-dense (rows, 512) slab so every
    store is a full-width unmasked vst, then tiled along the row axis with a
    'parallel' grid so v7x can shard the copy across its two TensorCores.
    """
    n = x.size
    dtype = x.dtype
    itemsize = jnp.dtype(dtype).itemsize
    s = _sublane_multiple(dtype)
    w = _LANE_BLOCK

    # Rows at `w` lanes, rounded up to the dtype-dependent sublane multiple.
    rows = max(s, _round_up(pl.cdiv(n, w), s))
    padded = rows * w

    # Tile rows targeting ~4 MiB/buffer; keep >=2 blocks when possible so the
    # second TensorCore on v7x isn't idle.
    target_rows = max(s, (_TARGET_BLOCK_BYTES // (w * itemsize)) // s * s)
    if rows > s:
        target_rows = min(target_rows, _round_up(pl.cdiv(rows, 2), s))
    blk_rows = min(target_rows, rows)
    grid = pl.cdiv(rows, blk_rows)   # partial last block handled by Pallas masking

    flat = x.reshape(-1)
    if padded != n:
        # Minimal pad only (common nice shapes hit padded == n and skip this).
        flat = jnp.pad(flat, (0, padded - n))
    x2d = flat.reshape(rows, w)

    out2d = pl.pallas_call(
        _identity_kernel,
        out_shape=jax.ShapeDtypeStruct((rows, w), dtype),
        grid_spec=pltpu.PrefetchScalarGridSpec(
            num_scalar_prefetch=0,
            grid=(grid,),
            in_specs=[pl.BlockSpec((blk_rows, w), lambda i: (i, 0))],
            out_specs=pl.BlockSpec((blk_rows, w), lambda i: (i, 0)),
        ),
        compiler_params=pltpu.CompilerParams(
            # Row-tile axis is independent -> shard across both TCs on v7x;
            # a no-op (free) on single-TC v5e/v6e.
            dimension_semantics=("parallel",),
            vmem_limit_bytes=_VMEM_LIMIT_BYTES,
        ),
        cost_estimate=pl.CostEstimate(
            flops=0, transcendentals=0, bytes_accessed=2 * padded * itemsize),
    )(x2d)

    out = out2d.reshape(-1)
    if padded != n:
        out = out[:n]
    return out.reshape(x.shape)


def template_model_forward(vis_feat, text_feat, vis_mask, text_mask, mode="train"):
    """Matches TemplateModel.forward semantics exactly: the reference body is `pass`.

    Zero device work (the optimum for a no-op forward); returns None.  The
    Pallas identity kernel above is a standalone debug path and is never
    launched from here.
    """
    return None


if __name__ == "__main__":
    key = jax.random.PRNGKey(0)
    k1, k2 = jax.random.split(key)

    B, S_VIS, S_TXT, D = 2, 16, 8, 32
    vis_feat = jax.random.normal(k1, (B, S_VIS, D), dtype=jnp.float32)
    text_feat = jax.random.normal(k2, (B, S_TXT, D), dtype=jnp.float32)
    vis_mask = jnp.ones((B, S_VIS), dtype=jnp.bool_)
    text_mask = jnp.ones((B, S_TXT), dtype=jnp.bool_)

    # Standalone verification of the Pallas data path (debug only): run once,
    # block on the result so it actually executes on hardware.
    vis_out = pallas_identity(vis_feat)
    txt_out = pallas_identity(text_feat)
    jax.block_until_ready((vis_out, txt_out))

    # Test-only bit-exactness check (kept out of the forward hot path).
    assert bool(jnp.all(vis_out == vis_feat))
    assert bool(jnp.all(txt_out == text_feat))
    assert vis_out.shape == vis_feat.shape and txt_out.shape == text_feat.shape

    # The actual forward: zero device work, returns None like the reference.
    out = template_model_forward(vis_feat, text_feat, vis_mask, text_mask)
    assert out is None

    print("KERNEL_OK")
</pallas_src>

<mosaic_0001>
module attributes {stable_mosaic.version = 11 : i64} {
  func.func @_identity_kernel(%arg0: i32, %arg1: memref<8x512xf32, #tpu.memory_space<vmem>>, %arg2: memref<8x512xf32, #tpu.memory_space<vmem>>) attributes {dimension_semantics = [#tpu.dimension_semantics<parallel>], iteration_bounds = array<i64: 1>, scalar_prefetch = 0 : i64, scratch_operands = 0 : i64, tpu.core_type = #tpu.core_type<tc>, window_params = [{transform_indices = @transform_0, window_bounds = array<i64: 8, 512>}, {transform_indices = @transform_1, window_bounds = array<i64: 8, 512>}]} {
    %c0 = arith.constant 0 : index
    %c0_0 = arith.constant 0 : index
    %0 = vector.load %arg1[%c0, %c0_0] : memref<8x512xf32, #tpu.memory_space<vmem>>, vector<8x512xf32>
    %c0_1 = arith.constant 0 : index
    %c0_2 = arith.constant 0 : index
    %1 = vector.load %arg2[%c0_1, %c0_2] : memref<8x512xf32, #tpu.memory_space<vmem>>, vector<8x512xf32>
    tpu.vector_store %arg2[%c0_1, %c0_2], %0 {strides = array<i32>} : memref<8x512xf32, #tpu.memory_space<vmem>>, vector<8x512xf32>,
    return
  }
  func.func @transform_0(%arg0: i32) -> (i32, i32) {
    %c0_i32 = arith.constant 0 : i32
    %c0_i32_0 = arith.constant 0 : i32
    return %arg0, %c0_i32 : i32, i32
  }
  func.func @transform_1(%arg0: i32) -> (i32, i32) {
    %c0_i32 = arith.constant 0 : i32
    %c0_i32_0 = arith.constant 0 : i32
    return %arg0, %c0_i32 : i32, i32
  }
}

</mosaic_0001>

<llo_original>
// kernel: pallas_identity.1
$region0: #{pallas_identity.1}
  #allocation0 [shape = 'u32[]', space=smem, size = 0x4, offset = 0x4, fixed_abs, tag = 'smem constant byte address 0x4 - core index']
  #allocation1 [shape = 'u32[144,128]{1,0:T(1,128)}', space=vmem, size = 0x12000, scoped, tag = 'internal scratch']
  %s0 = inlined_call_operand.vmem [shape: f32[8,512], index: 0, kind: input, shape index: {}]
  %s1 = inlined_call_operand.vmem [shape: f32[8,512], index: 1, kind: output, shape index: {}]
  %s2 = sld [smem:[#allocation0]]
  $region14: #{pallas_identity.1} parent=0
    _
  %s4 = ssub.s32 1, %s2
  %s5 = scalar_select 0, %s4, %s2
  // Predicated region
  $region2: #{pallas_identity.1} parent=0 // pred_check
    _
  $region3: #{pallas_identity.1} parent=0 // pred_check_branch
    %7 = sbr.rel (0) target = $region5
  $region4: #{pallas_identity.1} parent=0 // pred_region
    _
  $region5: #{pallas_identity.1} parent=0 // pred_fallthru
    _
  %v8 = vld [vmem:[%s0] sm:$0xff]
  %v9 = vld [vmem:[%s0 + $0x8] sm:$0xff]
  %v10 = vld [vmem:[%s0 + $0x10] sm:$0xff]
  %v11 = vld [vmem:[%s0 + $0x18] sm:$0xff]
  %12 = vst [vmem:[%s1] sm:$0xff] %v8
  %13 = vst [vmem:[%s1 + $0x8] sm:$0xff] %v9
  %14 = vst [vmem:[%s1 + $0x10] sm:$0xff] %v10
  %15 = vst [vmem:[%s1 + $0x18] sm:$0xff] %v11
  // Predicated region
  $region6: #{pallas_identity.1} parent=0 // pred_check
    _
  $region7: #{pallas_identity.1} parent=0 // pred_check_branch
    %17 = sbr.rel (0) target = $region9
  $region8: #{pallas_identity.1} parent=0 // pred_region
    _
  $region9: #{pallas_identity.1} parent=0 // pred_fallthru
    _
  // Predicated region
  $region10: #{pallas_identity.1} parent=0 // pred_check
    _
  $region11: #{pallas_identity.1} parent=0 // pred_check_branch
    %19 = sbr.rel (0) target = $region13
  $region12: #{pallas_identity.1} parent=0 // pred_region
    _
  $region13: #{pallas_identity.1} parent=0 // pred_fallthru
    _

</llo_original>
